<compile_context>
chip_gen: v7x
topology: tpu7x:2x2x1
jax: 0.10.0
libtpu: 0.0.40
codegen_flags: <defaults>
</compile_context>

<pallas_src>
from functools import partial

import numpy as np
import jax
import jax.numpy as jnp
from jax.experimental import pallas as pl
from jax.experimental.pallas import tpu as pltpu


# ----------------------------------------------------------------------------
# Fused kernel: one (downres+)DWT matmul -> q-sample noising -> 1x1-conv stand-in
# predictor -> MSE, all in VMEM, single invocation.
# ----------------------------------------------------------------------------
def _ddpm_fused_kernel(sc_ref, x_ref, g_ref, w_ref, noise_ref, o_ref, *, inv_total):
    """Shapes (RP = B*C rounded up to a multiple of 8):
       sc_ref    : SMEM (2,)            f32  [sqrt(acp[t]), sqrt(1-acp[t])]
       x_ref     : VMEM (RP, H*W)       f32  rows = (batch, channel), zero-padded
       g_ref     : VMEM (H*W, 8*Hh*Wh)  f32  lane-concatenated fused downres/DWT operators
       w_ref     : VMEM (RP, RP)        f32  stand-in predictor (block-diag CxC 1x1 conv)
       noise_ref : VMEM (RP, 8*Hh*Wh)   f32  U[0,1) noise (zero in padded rows)
       o_ref     : SMEM (1, 1)          f32  scalar MSE loss
    """
    # downres + both DWTs + DWSR residual + channel concat for the whole batch in ONE
    # MXU matmul: lanes are (path, band, spatial), sublanes are (batch, channel).
    x_cat = jnp.dot(x_ref[...], g_ref[...], preferred_element_type=jnp.float32)

    # apply_noise (q-sample, torch.rand_like-style uniform noise); f32 VPU elementwise.
    noise = noise_ref[...]
    x_noisy = sc_ref[0] * x_cat + sc_ref[1] * noise

    # TODO(synk): the reference UNet noise_predictor is not provided; this per-band 1x1
    # conv over the C input channels (block-diagonal left matmul on the (batch, channel)
    # sublane axis) is a deterministic stand-in.  Its zero padding rows/cols keep the
    # sublane padding out of the loss.
    pred = jnp.dot(w_ref[...], x_noisy, preferred_element_type=jnp.float32)

    # MSELoss(pred, noise): padded rows are exactly zero in both operands.
    d = pred - noise
    o_ref[0, 0] = jnp.sum(d * d) * inv_total


# ----------------------------------------------------------------------------
# Operator / parameter construction (host-side glue)
# ----------------------------------------------------------------------------
def resize_matrix(din, dout):
    """1-D bilinear resize matrix (half-pixel centers, antialiased when downscaling)."""
    scale = din / dout
    support = max(scale, 1.0)
    m = np.zeros((dout, din), np.float64)
    for i in range(dout):
        center = (i + 0.5) * scale - 0.5
        lo = int(np.floor(center - support))
        hi = int(np.ceil(center + support))
        js, ws = [], []
        for j in range(lo, hi + 1):
            w = max(0.0, 1.0 - abs(j - center) / support)
            if w > 0.0:
                js.append(min(max(j, 0), din - 1))
                ws.append(w)
        ws = np.asarray(ws, np.float64)
        ws /= ws.sum()
        for j, w in zip(js, ws):
            m[i, j] += w
    return m


def haar_matrices(n):
    """Analysis matrices for db1 (Haar): L (low-pass), G (high-pass), shape (n//2, n)."""
    h = n // 2
    r = 1.0 / np.sqrt(2.0)
    L = np.zeros((h, n), np.float64)
    G = np.zeros((h, n), np.float64)
    for i in range(h):
        L[i, 2 * i] = r
        L[i, 2 * i + 1] = r
        G[i, 2 * i] = -r          # pywt db1 dec_hi sign convention (see TODO below)
        G[i, 2 * i + 1] = r
    return L, G


def build_params(image_size, channels, batch_size, num_timesteps, key):
    """Precompute the batch-independent fused (downres+)DWT operator, the stand-in
    predictor weights and the noise schedule."""
    H = W = image_size
    Hh, Wh = H // 2, W // 2

    # downres = Resize(H//2) o Resize(H): composed 1-D bilinear operator R (H, H)
    down = resize_matrix(H, Hh)
    up = resize_matrix(Hh, H)
    R = up @ down

    # TODO(synk): validate Haar high-pass sign convention against pywt DWTForward.
    Lh, Gh = haar_matrices(H)

    # separable (row, col) operators for the 4 bands [LL, LH, HL, HH] of the hi-res DWT ...
    row_hr = [Lh, Gh, Lh, Gh]
    col_hr = [Lh.T, Lh.T, Gh.T, Gh.T]
    # ... and the low-res path with the downres folded in: DWT(R @ img @ R.T)
    row_lr = [A @ R for A in row_hr]
    col_lr = [R.T @ Bc for Bc in col_hr]

    ops = []
    for rows, cols in ((row_lr, col_lr), (row_hr, col_hr)):   # path 0 = lr, path 1 = residual
        for A, Bc in zip(rows, cols):
            # K[(h,w),(i,j)] = A[i,h]*Bc[w,j]  so that  vec_hw(img) @ K = vec_ij(A @ img @ Bc)
            ops.append(np.einsum('ih,wj->hwij', A, Bc).reshape(H * W, Hh * Wh))
    # Batch-independent, lane-concatenated operator (no kron(I_B, .)): one matmul yields
    # all 8 (path, band) sub-bands for the whole batch at once.
    G = np.concatenate(ops, axis=1).astype(np.float32)        # (H*W, 8*Hh*Wh)

    # Stand-in predictor: per-band 1x1 conv over the C input channels, applied from the
    # left as a per-sample block-diagonal matrix on the (batch, channel) sublane axis.
    rows_real = batch_size * channels
    rp = ((rows_real + 7) // 8) * 8                            # sublane-pad to 8
    Wc = 0.05 * np.asarray(jax.random.normal(key, (channels, channels), jnp.float32),
                           dtype=np.float32)
    Wl = np.zeros((rp, rp), np.float32)
    Wl[:rows_real, :rows_real] = np.kron(np.eye(batch_size, dtype=np.float32), Wc)

    # noise schedule (define_noise_schedule, mode='linear')
    betas = jnp.linspace(1e-6, 1e-2, num_timesteps, dtype=jnp.float32)
    acp = jnp.cumprod(1.0 - betas)

    return {
        "T": num_timesteps,
        "G": jnp.asarray(G),                                   # (H*W, 8*Hh*Wh) f32
        "Wl": jnp.asarray(Wl),                                 # (rp, rp) f32
        "rows_pad": rp,
        "sqrt_acp": jnp.sqrt(acp),
        "sqrt_1m_acp": jnp.sqrt(1.0 - acp),
    }


# ----------------------------------------------------------------------------
# DDPM.forward
# ----------------------------------------------------------------------------
def ddpm_forward(x, params, key):
    B, C, H, W = x.shape
    Hh, Wh = H // 2, W // 2
    rows = B * C
    rp = params["rows_pad"]
    n_lanes = 8 * Hh * Wh
    kt, kn = jax.random.split(key)

    # apply_noise: t ~ randint.  (The reference samples t in [1, T+1), which would index
    # out of range for a 0-based T-entry schedule; sample [0, T) instead.)
    t = jax.random.randint(kt, (), 0, params["T"])
    scalars = jnp.stack(
        [params["sqrt_acp"][t], params["sqrt_1m_acp"][t]]
    ).astype(jnp.float32)

    # torch.rand_like -> exact U[0,1) drawn host-side (in-kernel PRNG has no interpret
    # lowering); padded rows are zero so they vanish from the predictor and the MSE.
    noise = jax.random.uniform(kn, (rows, n_lanes), jnp.float32)
    noise = jnp.pad(noise, ((0, rp - rows), (0, 0)))

    # (B, C, H, W) -> (B*C, H*W): batch & channel on the sublane axis, spatial on lanes.
    x_in = x.reshape(rows, H * W).astype(jnp.float32)
    x_in = jnp.pad(x_in, ((0, rp - rows), (0, 0)))

    inv_total = 1.0 / float(B * 8 * C * Hh * Wh)               # MSE over x_cat elements

    # Single gridless fused call: at these shapes the kernel is launch/DMA-bound, so one
    # invocation on one TensorCore is minimal overhead.  For a training loop, wrap several
    # (x, t, noise) steps into a grid (PrefetchScalarGridSpec for t / scalars) with a
    # constant-index BlockSpec on G so the operator is DMA'd once and stays VMEM-resident,
    # and mark an independent grid axis "parallel" so v7x's second TensorCore is used.
    loss = pl.pallas_call(
        partial(_ddpm_fused_kernel, inv_total=inv_total),
        out_shape=jax.ShapeDtypeStruct((1, 1), jnp.float32),
        in_specs=[
            pl.BlockSpec(memory_space=pltpu.MemorySpace.SMEM),   # schedule scalars (2,)
            pl.BlockSpec(memory_space=pltpu.MemorySpace.VMEM),   # x (rp, H*W)
            pl.BlockSpec(memory_space=pltpu.MemorySpace.VMEM),   # fused operators G
            pl.BlockSpec(memory_space=pltpu.MemorySpace.VMEM),   # stand-in predictor Wl
            pl.BlockSpec(memory_space=pltpu.MemorySpace.VMEM),   # uniform noise
        ],
        out_specs=pl.BlockSpec(memory_space=pltpu.MemorySpace.SMEM),
    )(scalars, x_in, params["G"], params["Wl"], noise)

    # TODO(synk): loss.backward() + Adam optimiser.step() (training update) have no
    # forward-pass Pallas equivalent and are omitted; the scalar loss is returned.
    return loss[0, 0]


if __name__ == "__main__":
    B, C, IMG = 2, 3, 16
    T = 1000
    key = jax.random.PRNGKey(0)
    k_x, k_w, k_fwd = jax.random.split(key, 3)

    x = jax.random.normal(k_x, (B, C, IMG, IMG), jnp.float32)
    params = build_params(IMG, C, B, T, k_w)

    loss = ddpm_forward(x, params, k_fwd)
    jax.block_until_ready(loss)
    assert loss.shape == () and bool(jnp.isfinite(loss))
    print("KERNEL_OK")
</pallas_src>

<mosaic_0001>
module attributes {stable_mosaic.version = 11 : i64} {
  func.func @_ddpm_fused_kernel(%arg0: memref<2xf32, #tpu.memory_space<smem>>, %arg1: memref<8x256xf32, #tpu.memory_space<vmem>>, %arg2: memref<256x512xf32, #tpu.memory_space<vmem>>, %arg3: memref<8x8xf32, #tpu.memory_space<vmem>>, %arg4: memref<8x512xf32, #tpu.memory_space<vmem>>, %arg5: memref<1x1xf32, #tpu.memory_space<smem>>) attributes {dimension_semantics = [], scalar_prefetch = 0 : i64, scratch_operands = 0 : i64, tpu.core_type = #tpu.core_type<tc>} {
    %c0 = arith.constant 0 : index
    %c0_0 = arith.constant 0 : index
    %0 = vector.load %arg1[%c0, %c0_0] : memref<8x256xf32, #tpu.memory_space<vmem>>, vector<8x256xf32>
    %c0_1 = arith.constant 0 : index
    %c0_2 = arith.constant 0 : index
    %1 = vector.load %arg2[%c0_1, %c0_2] : memref<256x512xf32, #tpu.memory_space<vmem>>, vector<256x512xf32>
    %cst = arith.constant dense<0.000000e+00> : vector<8x512xf32>
    %2 = tpu.matmul %0, %1, %cst {dimension_numbers = #tpu.dot_dimension_numbers<[1], [0], [0], [1], [0, 0, 1, 1], [], []>} : vector<8x256xf32>, vector<256x512xf32>, vector<8x512xf32> -> vector<8x512xf32>
    %c0_3 = arith.constant 0 : index
    %c0_4 = arith.constant 0 : index
    %3 = vector.load %arg4[%c0_3, %c0_4] : memref<8x512xf32, #tpu.memory_space<vmem>>, vector<8x512xf32>
    %c0_5 = arith.constant 0 : index
    %4 = memref.load %arg0[%c0_5] : memref<2xf32, #tpu.memory_space<smem>>
    %5 = vector.broadcast %4 : f32 to vector<8x512xf32>
    %6 = arith.mulf %5, %2 : vector<8x512xf32>
    %c1 = arith.constant 1 : index
    %7 = memref.load %arg0[%c1] : memref<2xf32, #tpu.memory_space<smem>>
    %8 = vector.broadcast %7 : f32 to vector<8x512xf32>
    %9 = arith.mulf %8, %3 : vector<8x512xf32>
    %10 = arith.addf %6, %9 : vector<8x512xf32>
    %c0_6 = arith.constant 0 : index
    %c0_7 = arith.constant 0 : index
    %11 = vector.load %arg3[%c0_6, %c0_7] : memref<8x8xf32, #tpu.memory_space<vmem>>, vector<8x8xf32>
    %cst_8 = arith.constant dense<0.000000e+00> : vector<8x512xf32>
    %12 = tpu.matmul %11, %10, %cst_8 {dimension_numbers = #tpu.dot_dimension_numbers<[1], [0], [0], [1], [0, 0, 1, 1], [], []>} : vector<8x8xf32>, vector<8x512xf32>, vector<8x512xf32> -> vector<8x512xf32>
    %13 = arith.subf %12, %3 : vector<8x512xf32>
    %14 = arith.mulf %13, %13 : vector<8x512xf32>
    %15 = vector.shape_cast %14 : vector<8x512xf32> to vector<1x8x512xf32>
    %cst_9 = arith.constant dense<0.000000e+00> : vector<1xf32>
    %16 = vector.multi_reduction <add>, %15, %cst_9 [1, 2] : vector<1x8x512xf32> to vector<1xf32>
    %17 = vector.shape_cast %16 : vector<1xf32> to vector<1x1x1xf32>
    %18 = vector.extract %17[0, 0, 0] : f32 from vector<1x1x1xf32>
    %cst_10 = arith.constant 3.25520843E-4 : f32
    %19 = arith.mulf %18, %cst_10 : f32
    %c0_11 = arith.constant 0 : index
    %c0_12 = arith.constant 0 : index
    %20 = memref.load %arg5[%c0_11, %c0_12] : memref<1x1xf32, #tpu.memory_space<smem>>
    memref.store %19, %arg5[%c0_11, %c0_12] : memref<1x1xf32, #tpu.memory_space<smem>>
    return
  }
}

</mosaic_0001>

<llo_original>
// kernel: tpu_custom_call.1
$region0: #{tpu_custom_call.1}
  #allocation0 [shape = 'u32[]', space=smem, size = 0x4, offset = 0x4, fixed_abs, tag = 'smem constant byte address 0x4 - core index']
  #allocation1 [shape = 'u32[144,128]{1,0:T(1,128)}', space=vmem, size = 0x12000, scoped, tag = 'internal scratch']
  %s0 = inlined_call_operand.hbm [shape: f32[2], index: 0, kind: input, shape index: {}]
  %s1 = inlined_call_operand.hbm [shape: f32[8,256], index: 1, kind: input, shape index: {}]
  %s2 = inlined_call_operand.hbm [shape: f32[256,512], index: 2, kind: input, shape index: {}]
  %s3 = inlined_call_operand.vmem [shape: f32[8,8], index: 3, kind: input, shape index: {}]
  %s4 = inlined_call_operand.hbm [shape: f32[8,512], index: 4, kind: input, shape index: {}]
  %s5 = inlined_call_operand.hbm [shape: f32[1,1], index: 5, kind: output, shape index: {}]
  %s6 = sld [smem:[#allocation0]]
  $region46: #{tpu_custom_call.1} parent=0
    _
  %s8 = ssub.s32 1, %s6
  %s9 = scalar_select 0, %s8, %s6
  $region1: #{tpu_custom_call.1} parent=0
    #allocation2 [shape = 'u8[512]{0}', space=smem, size = 0x200, scoped, tag = 'input window, operand 0, single buffered']
    #allocation3 [shape = 's32[1]{0}', space=sflag, size = 0x4, scoped, tag = 'scoped memory for tpu_custom_call.1']
    #allocation4 [shape = 's32[1]{0}', space=sflag, size = 0x4, scoped, tag = 'scoped memory for tpu_custom_call.1']
    #allocation5 [shape = 's32[1]{0}', space=sflag, size = 0x4, scoped, tag = 'scoped memory for tpu_custom_call.1']
    #allocation6 [shape = 'u8[8192]{0}', space=vmem, size = 0x2000, scoped, tag = 'input window, operand 1, single buffered']
    #allocation7 [shape = 'u8[524288]{0}', space=vmem, size = 0x80000, scoped, tag = 'input window, operand 2, single buffered']
    #allocation8 [shape = 's32[1]{0}', space=sflag, size = 0x4, scoped, tag = 'scoped memory for tpu_custom_call.1']
    #allocation9 [shape = 'u8[16384]{0}', space=vmem, size = 0x4000, scoped, tag = 'input window, operand 4, single buffered']
    #allocation10 [shape = 'u8[512]{0}', space=smem, size = 0x200, scoped, tag = 'output window, operand 0, single buffered']
    %10 = vsyncpa [#allocation4], 0
    %11 = vsyncpa [#allocation3], 0
    %12 = vsyncpa [#allocation8], 0
    %13 = vsyncpa [#allocation5], 0
    // Predicated region
    $region2: #{tpu_custom_call.1} parent=1 // pred_check
      _
    $region3: #{tpu_custom_call.1} parent=1 // pred_check_branch
      %15 = sbr.rel (0) target = $region5
    $region4: #{tpu_custom_call.1} parent=1 // pred_region
      %s17 = ssub.s32 16, 16
      %18 = vsyncadd [#allocation4], %s17
      %21 = dma.hbm_to_smem %s0, 16, [#allocation2], [#allocation4]
    $region5: #{tpu_custom_call.1} parent=1 // pred_fallthru
      _
    // Predicated region
    $region6: #{tpu_custom_call.1} parent=1 // pred_check
      _
    $region7: #{tpu_custom_call.1} parent=1 // pred_check_branch
      %23 = sbr.rel (0) target = $region9
    $region8: #{tpu_custom_call.1} parent=1 // pred_region
      %s25 = ssub.s32 256, 256
      %26 = vsyncadd [#allocation3], %s25
      %s28 = sshll.u32 [#allocation6], 4
      %s29 = int_to_ptr.vmem [resolvable:$true] %s28
      %31 = dma.hbm_to_vmem [thread:$0]  %s1, 256, %s29, [#allocation3]
    $region9: #{tpu_custom_call.1} parent=1 // pred_fallthru
      _
    // Predicated region
    $region10: #{tpu_custom_call.1} parent=1 // pred_check
      _
    $region11: #{tpu_custom_call.1} parent=1 // pred_check_branch
      %33 = sbr.rel (0) target = $region13
    $region12: #{tpu_custom_call.1} parent=1 // pred_region
      %s35 = ssub.s32 16384, 16384
      %36 = vsyncadd [#allocation8], %s35
      %s37 = sshll.u32 [#allocation7], 4
      %s38 = int_to_ptr.vmem [resolvable:$true] %s37
      %43 = dma.hbm_to_vmem [thread:$0]  %s2, 16384, %s38, [#allocation8], 512, 512, 32
    $region13: #{tpu_custom_call.1} parent=1 // pred_fallthru
      _
    // Predicated region
    $region14: #{tpu_custom_call.1} parent=1 // pred_check
      _
    $region15: #{tpu_custom_call.1} parent=1 // pred_check_branch
      %45 = sbr.rel (0) target = $region17
    $region16: #{tpu_custom_call.1} parent=1 // pred_region
      _
    $region17: #{tpu_custom_call.1} parent=1 // pred_fallthru
      _
    // Predicated region
    $region18: #{tpu_custom_call.1} parent=1 // pred_check
      _
    $region19: #{tpu_custom_call.1} parent=1 // pred_check_branch
      %47 = sbr.rel (0) target = $region21
    $region20: #{tpu_custom_call.1} parent=1 // pred_region
      %s49 = ssub.s32 512, 512
      %50 = vsyncadd [#allocation8], %s49
      %s52 = sshll.u32 [#allocation9], 4
      %s53 = int_to_ptr.vmem [resolvable:$true] %s52
      %55 = dma.hbm_to_vmem [thread:$0]  %s4, 512, %s53, [#allocation8]
    $region21: #{tpu_custom_call.1} parent=1 // pred_fallthru
      _
    // Predicated region
    $region22: #{tpu_custom_call.1} parent=1 // pred_check
      _
    $region23: #{tpu_custom_call.1} parent=1 // pred_check_branch
      %57 = sbr.rel (0) target = $region25
    $region24: #{tpu_custom_call.1} parent=1 // pred_region
      %58 = dma.done [#allocation4], 16
    $region25: #{tpu_custom_call.1} parent=1 // pred_fallthru
      _
    // Predicated region
    $region26: #{tpu_custom_call.1} parent=1 // pred_check
      _
    $region27: #{tpu_custom_call.1} parent=1 // pred_check_branch
      %60 = sbr.rel (0) target = $region29
    $region28: #{tpu_custom_call.1} parent=1 // pred_region
      %61 = dma.done [#allocation3], 256
    $region29: #{tpu_custom_call.1} parent=1 // pred_fallthru
      _
    // Predicated region
    $region30: #{tpu_custom_call.1} parent=1 // pred_check
      _
    $region31: #{tpu_custom_call.1} parent=1 // pred_check_branch
      %63 = sbr.rel (0) target = $region33
    $region32: #{tpu_custom_call.1} parent=1 // pred_region
      %64 = dma.done [#allocation8], 16384
    $region33: #{tpu_custom_call.1} parent=1 // pred_fallthru
      _
    // Predicated region
    $region34: #{tpu_custom_call.1} parent=1 // pred_check
      _
    $region35: #{tpu_custom_call.1} parent=1 // pred_check_branch
      %66 = sbr.rel (0) target = $region37
    $region36: #{tpu_custom_call.1} parent=1 // pred_region
      %67 = dma.done [#allocation8], 512
    $region37: #{tpu_custom_call.1} parent=1 // pred_fallthru
      _
    %68 = sfence
    %v69 = vld [vmem:[#allocation6] sm:$0xff]
    %v70 = vld [vmem:[#allocation6 + $0x8] sm:$0xff]
    %v71 = vld [vmem:[#allocation7] sm:$0xff]
    %v72 = vld [vmem:[#allocation7 + $0x8] sm:$0xff]
    %v73 = vld [vmem:[#allocation7 + $0x10] sm:$0xff]
    %v74 = vld [vmem:[#allocation7 + $0x18] sm:$0xff]
    %v75 = vld [vmem:[#allocation7 + $0x20] sm:$0xff]
    %v76 = vld [vmem:[#allocation7 + $0x28] sm:$0xff]
    %v77 = vld [vmem:[#allocation7 + $0x30] sm:$0xff]
    %v78 = vld [vmem:[#allocation7 + $0x38] sm:$0xff]
    %v79 = vld [vmem:[#allocation7 + $0x40] sm:$0xff]
    %v80 = vld [vmem:[#allocation7 + $0x48] sm:$0xff]
    %v81 = vld [vmem:[#allocation7 + $0x50] sm:$0xff]
    %v82 = vld [vmem:[#allocation7 + $0x58] sm:$0xff]
    %v83 = vld [vmem:[#allocation7 + $0x60] sm:$0xff]
    %v84 = vld [vmem:[#allocation7 + $0x68] sm:$0xff]
    %v85 = vld [vmem:[#allocation7 + $0x70] sm:$0xff]
    %v86 = vld [vmem:[#allocation7 + $0x78] sm:$0xff]
    %v87 = vld [vmem:[#allocation7 + $0x80] sm:$0xff]
    %v88 = vld [vmem:[#allocation7 + $0x88] sm:$0xff]
    %v89 = vld [vmem:[#allocation7 + $0x90] sm:$0xff]
    %v90 = vld [vmem:[#allocation7 + $0x98] sm:$0xff]
    %v91 = vld [vmem:[#allocation7 + $0xa0] sm:$0xff]
    %v92 = vld [vmem:[#allocation7 + $0xa8] sm:$0xff]
    %v93 = vld [vmem:[#allocation7 + $0xb0] sm:$0xff]
    %v94 = vld [vmem:[#allocation7 + $0xb8] sm:$0xff]
    %v95 = vld [vmem:[#allocation7 + $0xc0] sm:$0xff]
    %v96 = vld [vmem:[#allocation7 + $0xc8] sm:$0xff]
    %v97 = vld [vmem:[#allocation7 + $0xd0] sm:$0xff]
    %v98 = vld [vmem:[#allocation7 + $0xd8] sm:$0xff]
    %v99 = vld [vmem:[#allocation7 + $0xe0] sm:$0xff]
    %v100 = vld [vmem:[#allocation7 + $0xe8] sm:$0xff]
    %v101 = vld [vmem:[#allocation7 + $0xf0] sm:$0xff]
    %v102 = vld [vmem:[#allocation7 + $0xf8] sm:$0xff]
    %v103 = vld [vmem:[#allocation7 + $0x100] sm:$0xff]
    %v104 = vld [vmem:[#allocation7 + $0x108] sm:$0xff]
    %v105 = vld [vmem:[#allocation7 + $0x110] sm:$0xff]
    %v106 = vld [vmem:[#allocation7 + $0x118] sm:$0xff]
    %v107 = vld [vmem:[#allocation7 + $0x120] sm:$0xff]
    %v108 = vld [vmem:[#allocation7 + $0x128] sm:$0xff]
    %v109 = vld [vmem:[#allocation7 + $0x130] sm:$0xff]
    %v110 = vld [vmem:[#allocation7 + $0x138] sm:$0xff]
    %v111 = vld [vmem:[#allocation7 + $0x140] sm:$0xff]
    %v112 = vld [vmem:[#allocation7 + $0x148] sm:$0xff]
    %v113 = vld [vmem:[#allocation7 + $0x150] sm:$0xff]
    %v114 = vld [vmem:[#allocation7 + $0x158] sm:$0xff]
    %v115 = vld [vmem:[#allocation7 + $0x160] sm:$0xff]
    %v116 = vld [vmem:[#allocation7 + $0x168] sm:$0xff]
    %v117 = vld [vmem:[#allocation7 + $0x170] sm:$0xff]
    %v118 = vld [vmem:[#allocation7 + $0x178] sm:$0xff]
    %v119 = vld [vmem:[#allocation7 + $0x180] sm:$0xff]
    %v120 = vld [vmem:[#allocation7 + $0x188] sm:$0xff]
    %v121 = vld [vmem:[#allocation7 + $0x190] sm:$0xff]
    %v122 = vld [vmem:[#allocation7 + $0x198] sm:$0xff]
    %v123 = vld [vmem:[#allocation7 + $0x1a0] sm:$0xff]
    %v124 = vld [vmem:[#allocation7 + $0x1a8] sm:$0xff]
    %v125 = vld [vmem:[#allocation7 + $0x1b0] sm:$0xff]
    %v126 = vld [vmem:[#allocation7 + $0x1b8] sm:$0xff]
    %v127 = vld [vmem:[#allocation7 + $0x1c0] sm:$0xff]
    %v128 = vld [vmem:[#allocation7 + $0x1c8] sm:$0xff]
    %v129 = vld [vmem:[#allocation7 + $0x1d0] sm:$0xff]
    %v130 = vld [vmem:[#allocation7 + $0x1d8] sm:$0xff]
    %v131 = vld [vmem:[#allocation7 + $0x1e0] sm:$0xff]
    %v132 = vld [vmem:[#allocation7 + $0x1e8] sm:$0xff]
    %v133 = vld [vmem:[#allocation7 + $0x1f0] sm:$0xff]
    %v134 = vld [vmem:[#allocation7 + $0x1f8] sm:$0xff]
    %v135 = vld [vmem:[#allocation7 + $0x200] sm:$0xff]
    %v136 = vld [vmem:[#allocation7 + $0x208] sm:$0xff]
    %v137 = vld [vmem:[#allocation7 + $0x210] sm:$0xff]
    %v138 = vld [vmem:[#allocation7 + $0x218] sm:$0xff]
    %v139 = vld [vmem:[#allocation7 + $0x220] sm:$0xff]
    %v140 = vld [vmem:[#allocation7 + $0x228] sm:$0xff]
    %v141 = vld [vmem:[#allocation7 + $0x230] sm:$0xff]
    %v142 = vld [vmem:[#allocation7 + $0x238] sm:$0xff]
    %v143 = vld [vmem:[#allocation7 + $0x240] sm:$0xff]
    %v144 = vld [vmem:[#allocation7 + $0x248] sm:$0xff]
    %v145 = vld [vmem:[#allocation7 + $0x250] sm:$0xff]
    %v146 = vld [vmem:[#allocation7 + $0x258] sm:$0xff]
    %v147 = vld [vmem:[#allocation7 + $0x260] sm:$0xff]
    %v148 = vld [vmem:[#allocation7 + $0x268] sm:$0xff]
    %v149 = vld [vmem:[#allocation7 + $0x270] sm:$0xff]
    %v150 = vld [vmem:[#allocation7 + $0x278] sm:$0xff]
    %v151 = vld [vmem:[#allocation7 + $0x280] sm:$0xff]
    %v152 = vld [vmem:[#allocation7 + $0x288] sm:$0xff]
    %v153 = vld [vmem:[#allocation7 + $0x290] sm:$0xff]
    %v154 = vld [vmem:[#allocation7 + $0x298] sm:$0xff]
    %v155 = vld [vmem:[#allocation7 + $0x2a0] sm:$0xff]
    %v156 = vld [vmem:[#allocation7 + $0x2a8] sm:$0xff]
    %v157 = vld [vmem:[#allocation7 + $0x2b0] sm:$0xff]
    %v158 = vld [vmem:[#allocation7 + $0x2b8] sm:$0xff]
    %v159 = vld [vmem:[#allocation7 + $0x2c0] sm:$0xff]
    %v160 = vld [vmem:[#allocation7 + $0x2c8] sm:$0xff]
    %v161 = vld [vmem:[#allocation7 + $0x2d0] sm:$0xff]
    %v162 = vld [vmem:[#allocation7 + $0x2d8] sm:$0xff]
    %v163 = vld [vmem:[#allocation7 + $0x2e0] sm:$0xff]
    %v164 = vld [vmem:[#allocation7 + $0x2e8] sm:$0xff]
    %v165 = vld [vmem:[#allocation7 + $0x2f0] sm:$0xff]
    %v166 = vld [vmem:[#allocation7 + $0x2f8] sm:$0xff]
    %v167 = vld [vmem:[#allocation7 + $0x300] sm:$0xff]
    %v168 = vld [vmem:[#allocation7 + $0x308] sm:$0xff]
    %v169 = vld [vmem:[#allocation7 + $0x310] sm:$0xff]
    %v170 = vld [vmem:[#allocation7 + $0x318] sm:$0xff]
    %v171 = vld [vmem:[#allocation7 + $0x320] sm:$0xff]
    %v172 = vld [vmem:[#allocation7 + $0x328] sm:$0xff]
    %v173 = vld [vmem:[#allocation7 + $0x330] sm:$0xff]
    %v174 = vld [vmem:[#allocation7 + $0x338] sm:$0xff]
    %v175 = vld [vmem:[#allocation7 + $0x340] sm:$0xff]
    %v176 = vld [vmem:[#allocation7 + $0x348] sm:$0xff]
    %v177 = vld [vmem:[#allocation7 + $0x350] sm:$0xff]
    %v178 = vld [vmem:[#allocation7 + $0x358] sm:$0xff]
    %v179 = vld [vmem:[#allocation7 + $0x360] sm:$0xff]
    %v180 = vld [vmem:[#allocation7 + $0x368] sm:$0xff]
    %v181 = vld [vmem:[#allocation7 + $0x370] sm:$0xff]
    %v182 = vld [vmem:[#allocation7 + $0x378] sm:$0xff]
    %v183 = vld [vmem:[#allocation7 + $0x380] sm:$0xff]
    %v184 = vld [vmem:[#allocation7 + $0x388] sm:$0xff]
    %v185 = vld [vmem:[#allocation7 + $0x390] sm:$0xff]
    %v186 = vld [vmem:[#allocation7 + $0x398] sm:$0xff]
    %v187 = vld [vmem:[#allocation7 + $0x3a0] sm:$0xff]
    %v188 = vld [vmem:[#allocation7 + $0x3a8] sm:$0xff]
    %v189 = vld [vmem:[#allocation7 + $0x3b0] sm:$0xff]
    %v190 = vld [vmem:[#allocation7 + $0x3b8] sm:$0xff]
    %v191 = vld [vmem:[#allocation7 + $0x3c0] sm:$0xff]
    %v192 = vld [vmem:[#allocation7 + $0x3c8] sm:$0xff]
    %v193 = vld [vmem:[#allocation7 + $0x3d0] sm:$0xff]
    %v194 = vld [vmem:[#allocation7 + $0x3d8] sm:$0xff]
    %v195 = vld [vmem:[#allocation7 + $0x3e0] sm:$0xff]
    %v196 = vld [vmem:[#allocation7 + $0x3e8] sm:$0xff]
    %v197 = vld [vmem:[#allocation7 + $0x3f0] sm:$0xff]
    %v198 = vld [vmem:[#allocation7 + $0x3f8] sm:$0xff]
    %199 = vmatprep.subr.mxu0 %v72
    %200 = vmatpush1.msra.mxu0 %v71
    %201 = vmatprep.subr.mxu0 %v76
    %202 = vmatpush1.msra.mxu0 %v75
    %203 = vmatprep.subr.mxu0 %v80
    %204 = vmatpush1.msra.mxu0 %v79
    %205 = vmatprep.subr.mxu0 %v84
    %206 = vmatpush1.msra.mxu0 %v83
    %207 = vmatprep.subr.mxu0 %v88
    %208 = vmatpush1.msra.mxu0 %v87
    %209 = vmatprep.subr.mxu0 %v92
    %210 = vmatpush1.msra.mxu0 %v91
    %211 = vmatprep.subr.mxu0 %v96
    %212 = vmatpush1.msra.mxu0 %v95
    %213 = vmatprep.subr.mxu0 %v100
    %214 = vmatpush1.msra.mxu0 %v99
    %215 = vmatprep.subr.mxu0 %v104
    %216 = vmatpush1.msra.mxu0 %v103
    %217 = vmatprep.subr.mxu0 %v108
    %218 = vmatpush1.msra.mxu0 %v107
    %219 = vmatprep.subr.mxu0 %v112
    %220 = vmatpush1.msra.mxu0 %v111
    %221 = vmatprep.subr.mxu0 %v116
    %222 = vmatpush1.msra.mxu0 %v115
    %223 = vmatprep.subr.mxu0 %v120
    %224 = vmatpush1.msra.mxu0 %v119
    %225 = vmatprep.subr.mxu0 %v124
    %226 = vmatpush1.msra.mxu0 %v123
    %227 = vmatprep.subr.mxu0 %v128
    %228 = vmatpush1.msra.mxu0 %v127
    %229 = vmatprep.subr.mxu0 %v132
    %230 = vmatpush1.msra.mxu0 %v131
    %231 = vmatprep.subr.mxu0 %v136
    %232 = vmatpush1.msra.mxu0 %v135
    %233 = vmatprep.subr.mxu0 %v140
    %234 = vmatpush1.msra.mxu0 %v139
    %235 = vmatprep.subr.mxu0 %v144
    %236 = vmatpush1.msra.mxu0 %v143
    %237 = vmatprep.subr.mxu0 %v148
    %238 = vmatpush1.msra.mxu0 %v147
    %239 = vmatprep.subr.mxu0 %v152
    %240 = vmatpush1.msra.mxu0 %v151
    %241 = vmatprep.subr.mxu0 %v156
    %242 = vmatpush1.msra.mxu0 %v155
    %243 = vmatprep.subr.mxu0 %v160
    %244 = vmatpush1.msra.mxu0 %v159
    %245 = vmatprep.subr.mxu0 %v164
    %246 = vmatpush1.msra.mxu0 %v163
    %247 = vmatprep.subr.mxu0 %v168
    %248 = vmatpush1.msra.mxu0 %v167
    %249 = vmatprep.subr.mxu0 %v172
    %250 = vmatpush1.msra.mxu0 %v171
    %251 = vmatprep.subr.mxu0 %v176
    %252 = vmatpush1.msra.mxu0 %v175
    %253 = vmatprep.subr.mxu0 %v180
    %254 = vmatpush1.msra.mxu0 %v179
    %255 = vmatprep.subr.mxu0 %v184
    %256 = vmatpush1.msra.mxu0 %v183
    %257 = vmatprep.subr.mxu0 %v188
    %258 = vmatpush1.msra.mxu0 %v187
    %259 = vmatprep.subr.mxu0 %v192
    %260 = vmatpush1.msra.mxu0 %v191
    %261 = vmatprep.subr.mxu0 %v196
    %262 = vmatpush1.msra.mxu0 %v195
    %263 = vmatprep.mubr.f32.mxu0 %v70
    %264 = vmatmul.mubr.f32.gmra.mrb[0].mxu0 %v69
    %v265 = vpop.f32.mrb[0].mxu0
    %v266 = vadd.f32 0.0, %v265
    %v267 = vpop.f32.mrb[0].mxu0
    %v268 = vadd.f32 0.0, %v267
    %269 = vdwg.mxu0
    %270 = vmatprep.subr.mxu0 %v74
    %271 = vmatpush1.msra.mxu0 %v73
    %272 = vmatprep.subr.mxu0 %v78
    %273 = vmatpush1.msra.mxu0 %v77
    %274 = vmatprep.subr.mxu0 %v82
    %275 = vmatpush1.msra.mxu0 %v81
    %276 = vmatprep.subr.mxu0 %v86
    %277 = vmatpush1.msra.mxu0 %v85
    %278 = vmatprep.subr.mxu0 %v90
    %279 = vmatpush1.msra.mxu0 %v89
    %280 = vmatprep.subr.mxu0 %v94
    %281 = vmatpush1.msra.mxu0 %v93
    %282 = vmatprep.subr.mxu0 %v98
    %283 = vmatpush1.msra.mxu0 %v97
    %284 = vmatprep.subr.mxu0 %v102
    %285 = vmatpush1.msra.mxu0 %v101
    %286 = vmatprep.subr.mxu0 %v106
    %287 = vmatpush1.msra.mxu0 %v105
    %288 = vmatprep.subr.mxu0 %v110
    %289 = vmatpush1.msra.mxu0 %v109
    %290 = vmatprep.subr.mxu0 %v114
    %291 = vmatpush1.msra.mxu0 %v113
    %292 = vmatprep.subr.mxu0 %v118
    %293 = vmatpush1.msra.mxu0 %v117
    %294 = vmatprep.subr.mxu0 %v122
    %295 = vmatpush1.msra.mxu0 %v121
    %296 = vmatprep.subr.mxu0 %v126
    %297 = vmatpush1.msra.mxu0 %v125
    %298 = vmatprep.subr.mxu0 %v130
    %299 = vmatpush1.msra.mxu0 %v129
    %300 = vmatprep.subr.mxu0 %v134
    %301 = vmatpush1.msra.mxu0 %v133
    %302 = vmatprep.subr.mxu0 %v138
    %303 = vmatpush1.msra.mxu0 %v137
    %304 = vmatprep.subr.mxu0 %v142
    %305 = vmatpush1.msra.mxu0 %v141
    %306 = vmatprep.subr.mxu0 %v146
    %307 = vmatpush1.msra.mxu0 %v145
    %308 = vmatprep.subr.mxu0 %v150
    %309 = vmatpush1.msra.mxu0 %v149
    %310 = vmatprep.subr.mxu0 %v154
    %311 = vmatpush1.msra.mxu0 %v153
    %312 = vmatprep.subr.mxu0 %v158
    %313 = vmatpush1.msra.mxu0 %v157
    %314 = vmatprep.subr.mxu0 %v162
    %315 = vmatpush1.msra.mxu0 %v161
    %316 = vmatprep.subr.mxu0 %v166
    %317 = vmatpush1.msra.mxu0 %v165
    %318 = vmatprep.subr.mxu0 %v170
    %319 = vmatpush1.msra.mxu0 %v169
    %320 = vmatprep.subr.mxu0 %v174
    %321 = vmatpush1.msra.mxu0 %v173
    %322 = vmatprep.subr.mxu0 %v178
    %323 = vmatpush1.msra.mxu0 %v177
    %324 = vmatprep.subr.mxu0 %v182
    %325 = vmatpush1.msra.mxu0 %v181
    %326 = vmatprep.subr.mxu0 %v186
    %327 = vmatpush1.msra.mxu0 %v185
    %328 = vmatprep.subr.mxu0 %v190
    %329 = vmatpush1.msra.mxu0 %v189
    %330 = vmatprep.subr.mxu0 %v194
    %331 = vmatpush1.msra.mxu0 %v193
    %332 = vmatprep.subr.mxu0 %v198
    %333 = vmatpush1.msra.mxu0 %v197
    %334 = vmatprep.mubr.f32.mxu0 %v70
    %335 = vmatmul.mubr.f32.gmra.mrb[0].mxu0 %v69
    %v336 = vpop.f32.mrb[0].mxu0
    %v337 = vadd.f32 0.0, %v336
    %v338 = vpop.f32.mrb[0].mxu0
    %v339 = vadd.f32 0.0, %v338
    %340 = vdwg.mxu0
    %v341 = vld [vmem:[#allocation9] sm:$0xff]
    %v342 = vld [vmem:[#allocation9 + $0x8] sm:$0xff]
    %v343 = vld [vmem:[#allocation9 + $0x10] sm:$0xff]
    %v344 = vld [vmem:[#allocation9 + $0x18] sm:$0xff]
    %s345 = sld [smem:[#allocation2]]
    %v346 = vstv %s345
    %v347 = vmul.f32 %v346, %v266
    %v348 = vmul.f32 %v346, %v268
    %v349 = vmul.f32 %v346, %v337
    %v350 = vmul.f32 %v346, %v339
    %s351 = sld [smem:[#allocation2 + $0x1]]
    %v352 = vstv %s351
    %v353 = vmul.f32 %v352, %v341
    %v354 = vmul.f32 %v352, %v342
    %v355 = vmul.f32 %v352, %v343
    %v356 = vmul.f32 %v352, %v344
    %v357 = vadd.f32 %v347, %v353
    %v358 = vadd.f32 %v348, %v354
    %v359 = vadd.f32 %v349, %v355
    %v360 = vadd.f32 %v350, %v356
    %v361 = vld [vmem:[%s3] sm:$0xff]
    %vm362 = vcmask 64512
    %v364 = vsel %vm362, %v361, 0
    %366 = vmatprep.subr.mxu0 %v358
    %367 = vmatpush1.msra.mxu0 %v357
    %368 = vmatprep.subr.mxu0 0.0
    %369 = vmatpush1.msra.mxu0 0.0
    %370 = vmatprep.subr.mxu0 0.0
    %371 = vmatpush1.msra.mxu0 0.0
    %372 = vmatprep.subr.mxu0 0.0
    %373 = vmatpush1.msra.mxu0 0.0
    %374 = vmatprep.subr.mxu0 0.0
    %375 = vmatpush1.msra.mxu0 0.0
    %376 = vmatprep.subr.mxu0 0.0
    %377 = vmatpush1.msra.mxu0 0.0
    %378 = vmatprep.subr.mxu0 0.0
    %379 = vmatpush1.msra.mxu0 0.0
    %380 = vmatprep.subr.mxu0 0.0
    %381 = vmatpush1.msra.mxu0 0.0
    %382 = vmatprep.subr.mxu0 0.0
    %383 = vmatpush1.msra.mxu0 0.0
    %384 = vmatprep.subr.mxu0 0.0
    %385 = vmatpush1.msra.mxu0 0.0
    %386 = vmatprep.subr.mxu0 0.0
    %387 = vmatpush1.msra.mxu0 0.0
    %388 = vmatprep.subr.mxu0 0.0
    %389 = vmatpush1.msra.mxu0 0.0
    %390 = vmatprep.subr.mxu0 0.0
    %391 = vmatpush1.msra.mxu0 0.0
    %392 = vmatprep.subr.mxu0 0.0
    %393 = vmatpush1.msra.mxu0 0.0
    %394 = vmatprep.subr.mxu0 0.0
    %395 = vmatpush1.msra.mxu0 0.0
    %396 = vmatprep.subr.mxu0 0.0
    %397 = vmatpush1.msra.mxu0 0.0
    %398 = vmatprep.subr.mxu0 0.0
    %399 = vmatpush1.msra.mxu0 0.0
    %400 = vmatprep.subr.mxu0 0.0
    %401 = vmatpush1.msra.mxu0 0.0
    %402 = vmatprep.subr.mxu0 0.0
    %403 = vmatpush1.msra.mxu0 0.0
    %404 = vmatprep.subr.mxu0 0.0
    %405 = vmatpush1.msra.mxu0 0.0
    %406 = vmatprep.subr.mxu0 0.0
    %407 = vmatpush1.msra.mxu0 0.0
    %408 = vmatprep.subr.mxu0 0.0
    %409 = vmatpush1.msra.mxu0 0.0
    %410 = vmatprep.subr.mxu0 0.0
    %411 = vmatpush1.msra.mxu0 0.0
    %412 = vmatprep.subr.mxu0 0.0
    %413 = vmatpush1.msra.mxu0 0.0
    %414 = vmatprep.subr.mxu0 0.0
    %415 = vmatpush1.msra.mxu0 0.0
    %416 = vmatprep.subr.mxu0 0.0
    %417 = vmatpush1.msra.mxu0 0.0
    %418 = vmatprep.subr.mxu0 0.0
    %419 = vmatpush1.msra.mxu0 0.0
    %420 = vmatprep.subr.mxu0 0.0
    %421 = vmatpush1.msra.mxu0 0.0
    %422 = vmatprep.subr.mxu0 0.0
    %423 = vmatpush1.msra.mxu0 0.0
    %424 = vmatprep.subr.mxu0 0.0
    %425 = vmatpush1.msra.mxu0 0.0
    %426 = vmatprep.subr.mxu0 0.0
    %427 = vmatpush1.msra.mxu0 0.0
    %428 = vmatprep.subr.mxu0 0.0
    %429 = vmatpush1.msra.mxu0 0.0
    %430 = vmatprep.mubr.f32.mxu0 0.0
    %431 = vmatmul.mubr.f32.gmra.mrb[0].mxu0 %v364
    %v432 = vpop.f32.mrb[0].mxu0
    %v433 = vadd.f32 0.0, %v432
    %v434 = vpop.f32.mrb[0].mxu0
    %v435 = vadd.f32 0.0, %v434
    %436 = vdwg.mxu0
    %437 = vmatprep.subr.mxu0 %v360
    %438 = vmatpush1.msra.mxu0 %v359
    %439 = vmatprep.subr.mxu0 0.0
    %440 = vmatpush1.msra.mxu0 0.0
    %441 = vmatprep.subr.mxu0 0.0
    %442 = vmatpush1.msra.mxu0 0.0
    %443 = vmatprep.subr.mxu0 0.0
    %444 = vmatpush1.msra.mxu0 0.0
    %445 = vmatprep.subr.mxu0 0.0
    %446 = vmatpush1.msra.mxu0 0.0
    %447 = vmatprep.subr.mxu0 0.0
    %448 = vmatpush1.msra.mxu0 0.0
    %449 = vmatprep.subr.mxu0 0.0
    %450 = vmatpush1.msra.mxu0 0.0
    %451 = vmatprep.subr.mxu0 0.0
    %452 = vmatpush1.msra.mxu0 0.0
    %453 = vmatprep.subr.mxu0 0.0
    %454 = vmatpush1.msra.mxu0 0.0
    %455 = vmatprep.subr.mxu0 0.0
    %456 = vmatpush1.msra.mxu0 0.0
    %457 = vmatprep.subr.mxu0 0.0
    %458 = vmatpush1.msra.mxu0 0.0
    %459 = vmatprep.subr.mxu0 0.0
    %460 = vmatpush1.msra.mxu0 0.0
    %461 = vmatprep.subr.mxu0 0.0
    %462 = vmatpush1.msra.mxu0 0.0
    %463 = vmatprep.subr.mxu0 0.0
    %464 = vmatpush1.msra.mxu0 0.0
    %465 = vmatprep.subr.mxu0 0.0
    %466 = vmatpush1.msra.mxu0 0.0
    %467 = vmatprep.subr.mxu0 0.0
    %468 = vmatpush1.msra.mxu0 0.0
    %469 = vmatprep.subr.mxu0 0.0
    %470 = vmatpush1.msra.mxu0 0.0
    %471 = vmatprep.subr.mxu0 0.0
    %472 = vmatpush1.msra.mxu0 0.0
    %473 = vmatprep.subr.mxu0 0.0
    %474 = vmatpush1.msra.mxu0 0.0
    %475 = vmatprep.subr.mxu0 0.0
    %476 = vmatpush1.msra.mxu0 0.0
    %477 = vmatprep.subr.mxu0 0.0
    %478 = vmatpush1.msra.mxu0 0.0
    %479 = vmatprep.subr.mxu0 0.0
    %480 = vmatpush1.msra.mxu0 0.0
    %481 = vmatprep.subr.mxu0 0.0
    %482 = vmatpush1.msra.mxu0 0.0
    %483 = vmatprep.subr.mxu0 0.0
    %484 = vmatpush1.msra.mxu0 0.0
    %485 = vmatprep.subr.mxu0 0.0
    %486 = vmatpush1.msra.mxu0 0.0
    %487 = vmatprep.subr.mxu0 0.0
    %488 = vmatpush1.msra.mxu0 0.0
    %489 = vmatprep.subr.mxu0 0.0
    %490 = vmatpush1.msra.mxu0 0.0
    %491 = vmatprep.subr.mxu0 0.0
    %492 = vmatpush1.msra.mxu0 0.0
    %493 = vmatprep.subr.mxu0 0.0
    %494 = vmatpush1.msra.mxu0 0.0
    %495 = vmatprep.subr.mxu0 0.0
    %496 = vmatpush1.msra.mxu0 0.0
    %497 = vmatprep.subr.mxu0 0.0
    %498 = vmatpush1.msra.mxu0 0.0
    %499 = vmatprep.subr.mxu0 0.0
    %500 = vmatpush1.msra.mxu0 0.0
    %501 = vmatprep.mubr.f32.mxu0 0.0
    %502 = vmatmul.mubr.f32.gmra.mrb[0].mxu0 %v364
    %v503 = vpop.f32.mrb[0].mxu0
    %v504 = vadd.f32 0.0, %v503
    %v505 = vpop.f32.mrb[0].mxu0
    %v506 = vadd.f32 0.0, %v505
    %507 = vdwg.mxu0
    %v508 = vsub.f32 %v433, %v341
    %v509 = vsub.f32 %v435, %v342
    %v510 = vsub.f32 %v504, %v343
    %v511 = vsub.f32 %v506, %v344
    %v512 = vmul.f32 %v508, %v508
    %v513 = vmul.f32 %v509, %v509
    %v514 = vmul.f32 %v510, %v510
    %v515 = vmul.f32 %v511, %v511
    %v516 = vadd.f32 %v512, %v513
    %v517 = vadd.f32 %v516, %v514
    %v518 = vadd.f32 %v517, %v515
    %519 = vadd.xlane.f32.xlu0 %v518
    %v520 = vpop.xlane.xlu0 %519
    %v521 = vrot.slane %v520, 4
    %v522 = vadd.f32 %v520, %v521
    %v523 = vrot.slane %v522, 2
    %v524 = vadd.f32 %v522, %v523
    %v525 = vrot.slane %v524, 1
    %v526 = vadd.f32 %v524, %v525
    %s527 = vtos %v526
    %s528 = smul.f32 %s527, 0.00032552084
    %s529 = scalar_lea.smem [#allocation10], 0
    %530 = sst [smem:[%s529]] %s528
    // Predicated region
    $region38: #{tpu_custom_call.1} parent=1 // pred_check
      _
    $region39: #{tpu_custom_call.1} parent=1 // pred_check_branch
      %532 = sbr.rel (0) target = $region41
    $region40: #{tpu_custom_call.1} parent=1 // pred_region
      %s534 = ssub.s32 16, 16
      %535 = vsyncadd [#allocation5], %s534
      %538 = dma.smem_to_hbm [#allocation10], 16, %s5, [#allocation5]
    $region41: #{tpu_custom_call.1} parent=1 // pred_fallthru
      _
    // Predicated region
    $region42: #{tpu_custom_call.1} parent=1 // pred_check
      _
    $region43: #{tpu_custom_call.1} parent=1 // pred_check_branch
      %540 = sbr.rel (0) target = $region45
    $region44: #{tpu_custom_call.1} parent=1 // pred_region
      %541 = dma.done [#allocation5], 16
    $region45: #{tpu_custom_call.1} parent=1 // pred_fallthru
      _
    %542 = sfence
    %543 = vsyncpa [#allocation3], 1
    %544 = vsyncpa [#allocation8], 1
    %545 = vsyncpa [#allocation4], 1
    %546 = vsyncpa [#allocation5], 1

</llo_original>
